<compile_context>
chip_gen: v7x
topology: tpu7x:2x2x1
jax: 0.10.0
libtpu: 0.0.40
codegen_flags: <defaults>
</compile_context>

<pallas_src>
import functools
import math

import jax
import jax.numpy as jnp
from jax.experimental import pallas as pl
from jax.experimental.pallas import tpu as pltpu


_VMEM_LIMIT = 40 * 1024 * 1024  # largest kernel working set ~21 MB; leaves headroom on v7x (64 MiB)


# ----------------------------------------------------------------------------
# helpers
# ----------------------------------------------------------------------------
def _num_lane_chunks(rows, hw):
    """Split the lane (HW) axis so per-chunk f32 temporaries stay ~<= 1 MB."""
    nch = max(1, (rows * hw) // (256 * 1024))
    while nch > 1 and (hw % nch or (hw // nch) % 128):
        nch -= 1
    return nch


def _group_avg_matrix(rows, channels, groups, elems_per_group):
    """A[r, r'] = 1/elems_per_group if rows r, r' map to the same GroupNorm group."""
    cg = channels // groups
    gid = (jnp.arange(rows) % channels) // cg
    mask = (gid[:, None] == gid[None, :]).astype(jnp.float32)
    return mask / float(elems_per_group)


def _gn_stats(acc_ref, a_ref, rows, hw, nch, eps):
    """Per-row mean / rsqrt(var) with group aggregation via the A matrix (chunked over lanes)."""
    chunk = hw // nch
    s1 = jnp.zeros((rows, 1), jnp.float32)
    s2 = jnp.zeros((rows, 1), jnp.float32)
    for c in range(nch):
        y = acc_ref[:, pl.ds(c * chunk, chunk)]
        s1 = s1 + jnp.sum(y, axis=1, keepdims=True)
        s2 = s2 + jnp.sum(y * y, axis=1, keepdims=True)
    mean = jnp.dot(a_ref[...], s1, preferred_element_type=jnp.float32)
    ex2 = jnp.dot(a_ref[...], s2, preferred_element_type=jnp.float32)
    var = jnp.maximum(ex2 - mean * mean, 0.0)  # guard single-pass cancellation (no NaN in rsqrt)
    return mean, jax.lax.rsqrt(var + eps)


# ----------------------------------------------------------------------------
# kernels
# ----------------------------------------------------------------------------
def _linear_relu_kernel(x_ref, w_ref, b_ref, o_ref):
    y = jnp.dot(x_ref[...], w_ref[...], preferred_element_type=jnp.float32)
    o_ref[...] = jnp.maximum(y + b_ref[...], 0.0).astype(o_ref.dtype)


def _convt_gn_relu_kernel(x_ref, w_ref, b_ref, g_ref, be_ref, a_ref, o_ref, acc_ref,
                          *, hw, nch, eps):
    rows = acc_ref.shape[0]
    # ConvTranspose (kernel == stride) == single matmul; bias folded into the first write.
    acc_ref[...] = (jnp.dot(w_ref[...], x_ref[0], preferred_element_type=jnp.float32)
                    + b_ref[...])
    mean, rsig = _gn_stats(acc_ref, a_ref, rows, hw, nch, eps)
    scale = rsig * g_ref[...]
    shift = be_ref[...] - mean * scale
    chunk = hw // nch
    for c in range(nch):
        y = acc_ref[:, pl.ds(c * chunk, chunk)]
        y = jnp.maximum(y * scale + shift, 0.0)
        o_ref[0, :, pl.ds(c * chunk, chunk)] = y.astype(o_ref.dtype)


def _conv3_accumulate(xs_ref, w_ref, b_ref, acc_ref, taps, hw):
    first = True
    for t, (sel, off) in enumerate(taps):
        xt = xs_ref[0, sel, :, pl.ds(off, hw)]                  # (Cin, HW) bf16, aligned slice
        d = jnp.dot(w_ref[t], xt, preferred_element_type=jnp.float32)
        if first:
            acc_ref[...] = d + b_ref[...]                       # bias folded into first write
            first = False
        else:
            acc_ref[...] += d


def _conv3_gn_relu_kernel(xs_ref, w_ref, b_ref, g_ref, be_ref, a_ref, o_ref, acc_ref,
                          *, taps, hw, nch, eps):
    rows = acc_ref.shape[0]
    _conv3_accumulate(xs_ref, w_ref, b_ref, acc_ref, taps, hw)
    mean, rsig = _gn_stats(acc_ref, a_ref, rows, hw, nch, eps)
    scale = rsig * g_ref[...]
    shift = be_ref[...] - mean * scale
    chunk = hw // nch
    for c in range(nch):
        y = acc_ref[:, pl.ds(c * chunk, chunk)]
        y = jnp.maximum(y * scale + shift, 0.0)
        o_ref[0, :, pl.ds(c * chunk, chunk)] = y.astype(o_ref.dtype)


def _conv3_gn_relu_head_kernel(xs_ref, w_ref, b_ref, g_ref, be_ref, a_ref,
                               hw_ref, hb_ref, o_ref, acc_ref,
                               *, taps, hw, nch, eps):
    # 3x3 conv + GN + ReLU + fused 1x1 conv + Sigmoid (the full-res activation never hits HBM).
    rows = acc_ref.shape[0]
    _conv3_accumulate(xs_ref, w_ref, b_ref, acc_ref, taps, hw)
    mean, rsig = _gn_stats(acc_ref, a_ref, rows, hw, nch, eps)
    scale = rsig * g_ref[...]
    shift = be_ref[...] - mean * scale
    chunk = hw // nch
    for c in range(nch):
        y = acc_ref[:, pl.ds(c * chunk, chunk)]
        y = jnp.maximum(y * scale + shift, 0.0)                  # (C, chunk) f32
        z = jnp.dot(hw_ref[...], y, preferred_element_type=jnp.float32) + hb_ref[...]
        o_ref[0, :, pl.ds(c * chunk, chunk)] = jax.nn.sigmoid(z)


# ----------------------------------------------------------------------------
# wrappers
# ----------------------------------------------------------------------------
def linear_relu(x, w, b, *, tn):
    B, K = x.shape
    N = w.shape[1]
    assert N % tn == 0
    return pl.pallas_call(
        _linear_relu_kernel,
        out_shape=jax.ShapeDtypeStruct((B, N), jnp.bfloat16),
        grid_spec=pltpu.PrefetchScalarGridSpec(
            num_scalar_prefetch=0,
            grid=(N // tn,),
            in_specs=[
                pl.BlockSpec((B, K), lambda j: (0, 0)),
                pl.BlockSpec((K, tn), lambda j: (0, j)),
                pl.BlockSpec((1, tn), lambda j: (0, j)),
            ],
            out_specs=pl.BlockSpec((B, tn), lambda j: (0, j)),
        ),
        compiler_params=pltpu.CompilerParams(
            dimension_semantics=("parallel",),
            vmem_limit_bytes=_VMEM_LIMIT,
        ),
    )(x.astype(jnp.bfloat16), w, b)


def convt_gn_relu(x, p, *, eps=1e-5):
    """x: (B, Cin, HWin) bf16 -> (B, s*s*Cout, HWin) bf16 (rows ordered (dy, dx, co))."""
    x = x.astype(jnp.bfloat16)
    B, cin, hw = x.shape
    rows = p["w2"].shape[0]
    nch = _num_lane_chunks(rows, hw)
    return pl.pallas_call(
        functools.partial(_convt_gn_relu_kernel, hw=hw, nch=nch, eps=eps),
        out_shape=jax.ShapeDtypeStruct((B, rows, hw), jnp.bfloat16),
        grid_spec=pltpu.PrefetchScalarGridSpec(
            num_scalar_prefetch=0,
            grid=(B,),
            in_specs=[
                pl.BlockSpec((1, cin, hw), lambda b: (b, 0, 0)),
                pl.BlockSpec((rows, cin), lambda b: (0, 0)),
                pl.BlockSpec((rows, 1), lambda b: (0, 0)),
                pl.BlockSpec((rows, 1), lambda b: (0, 0)),
                pl.BlockSpec((rows, 1), lambda b: (0, 0)),
                pl.BlockSpec((rows, rows), lambda b: (0, 0)),
            ],
            out_specs=pl.BlockSpec((1, rows, hw), lambda b: (b, 0, 0)),
            scratch_shapes=[pltpu.VMEM((rows, hw), jnp.float32)],
        ),
        compiler_params=pltpu.CompilerParams(
            dimension_semantics=("parallel",),
            vmem_limit_bytes=_VMEM_LIMIT,
        ),
    )(x, p["w2"], p["bcol"], p["gcol"], p["becol"], p["A"])


def _depth_to_space(y, s, cout, hin, win):
    """(B, s*s*Cout, Hin*Win), rows ordered (dy,dx,co) -> (B, Cout, Hout*Wout)."""
    B = y.shape[0]
    y = y.reshape(B, s, s, cout, hin, win)
    y = jnp.transpose(y, (0, 3, 4, 1, 5, 2))
    return y.reshape(B, cout, hin * s * win * s)


def conv3_gn_relu(x_chw, p, *, H, W, head=None, eps=1e-5):
    """3x3 pad-1 conv + GN + ReLU (optionally fused 1x1 conv + sigmoid head).

    x_chw: (B, C, H*W) bf16 channel-major."""
    x_chw = x_chw.astype(jnp.bfloat16)
    B, C, _ = x_chw.shape
    cout = p["w9"].shape[1]
    hw = H * W
    xi = x_chw.reshape(B, C, H, W)
    xp = jnp.pad(xi, ((0, 0), (0, 0), (1, 1), (1, 1)))
    if W % 128 == 0:
        # Lane-aligned big map: only 3 dx-shifted copies; dy taps are in-kernel lane slices.
        xs = jnp.stack([xp[:, :, :, dx:dx + W].reshape(B, C, (H + 2) * W)
                        for dx in range(3)], axis=1)
        taps = tuple((dx, dy * W) for dy in range(3) for dx in range(3))
    else:
        # Small maps: 9 pre-shifted copies (few hundred KB), everything full-slice aligned.
        xs = jnp.stack([xp[:, :, dy:dy + H, dx:dx + W].reshape(B, C, hw)
                        for dy in range(3) for dx in range(3)], axis=1)
        taps = tuple((t, 0) for t in range(9))
    ncopy, lw = xs.shape[1], xs.shape[3]
    nch = _num_lane_chunks(cout, hw)

    in_specs = [
        pl.BlockSpec((1, ncopy, C, lw), lambda b: (b, 0, 0, 0)),
        pl.BlockSpec((9, cout, C), lambda b: (0, 0, 0)),
        pl.BlockSpec((cout, 1), lambda b: (0, 0)),
        pl.BlockSpec((cout, 1), lambda b: (0, 0)),
        pl.BlockSpec((cout, 1), lambda b: (0, 0)),
        pl.BlockSpec((cout, cout), lambda b: (0, 0)),
    ]
    args = [xs, p["w9"], p["bcol"], p["gcol"], p["becol"], p["A"]]
    if head is None:
        kern = functools.partial(_conv3_gn_relu_kernel, taps=taps, hw=hw, nch=nch, eps=eps)
        out_shape = jax.ShapeDtypeStruct((B, cout, hw), jnp.bfloat16)
        out_spec = pl.BlockSpec((1, cout, hw), lambda b: (b, 0, 0))
    else:
        cih = head["w"].shape[0]
        kern = functools.partial(_conv3_gn_relu_head_kernel, taps=taps, hw=hw, nch=nch, eps=eps)
        in_specs += [pl.BlockSpec((cih, C), lambda b: (0, 0)),
                     pl.BlockSpec((cih, 1), lambda b: (0, 0))]
        args += [head["w"], head["b"]]
        out_shape = jax.ShapeDtypeStruct((B, cih, hw), jnp.float32)
        out_spec = pl.BlockSpec((1, cih, hw), lambda b: (b, 0, 0))

    return pl.pallas_call(
        kern,
        out_shape=out_shape,
        grid_spec=pltpu.PrefetchScalarGridSpec(
            num_scalar_prefetch=0,
            grid=(B,),
            in_specs=in_specs,
            out_specs=out_spec,
            scratch_shapes=[pltpu.VMEM((cout, hw), jnp.float32)],
        ),
        compiler_params=pltpu.CompilerParams(
            dimension_semantics=("parallel",),
            vmem_limit_bytes=_VMEM_LIMIT,
        ),
    )(*args)


# ----------------------------------------------------------------------------
# parameters (deterministic synthetic init, pre-packed in kernel-ready layouts)
# ----------------------------------------------------------------------------
def init_params(key, in_channels=1, z_dim=512, init_features=64):
    f = init_features
    keys = iter(jax.random.split(key, 128))

    def rand(shape, scale):
        return jax.random.normal(next(keys), shape, jnp.float32) * scale

    params = {"features": f, "in_channels": in_channels}
    params["lin1"] = dict(w=rand((z_dim, 512), 1.0 / math.sqrt(z_dim)).astype(jnp.bfloat16),
                          b=rand((1, 512), 0.02))
    n2 = 16 * f * 8 * 8
    params["lin2"] = dict(w=rand((512, n2), 1.0 / math.sqrt(512)).astype(jnp.bfloat16),
                          b=rand((1, n2), 0.02))

    stage_cfg = [  # (cin, cout, stride==kernel, groups)
        (16 * f, 8 * f, 2, f // 2),
        (8 * f, 4 * f, 2, f // 4),
        (4 * f, 2 * f, 2, f // 8),
        (2 * f, f, 4, max(f // 16, 1)),
    ]
    hin = 8
    stages = []
    for cin, cout, s, g in stage_cfg:
        hwin = hin * hin
        hout = hin * s
        hwout = hout * hout
        rows = s * s * cout
        cg = cout // g
        # PyTorch layouts: ConvTranspose2d weight (Cin,Cout,k,k); Conv2d weight (Cout,Cin,3,3)
        tw = rand((cin, cout, s, s), 1.0 / math.sqrt(cin * s * s))
        tb = rand((cout,), 0.02)
        g1 = 1.0 + rand((cout,), 0.1)
        b1 = rand((cout,), 0.1)
        cw = rand((cout, cout, 3, 3), 1.0 / math.sqrt(cout * 9))
        cb = rand((cout,), 0.02)
        g2 = 1.0 + rand((cout,), 0.1)
        b2 = rand((cout,), 0.1)
        convt = dict(
            w2=jnp.transpose(tw, (2, 3, 1, 0)).reshape(rows, cin).astype(jnp.bfloat16),
            bcol=jnp.tile(tb, s * s).reshape(rows, 1),
            gcol=jnp.tile(g1, s * s).reshape(rows, 1),
            becol=jnp.tile(b1, s * s).reshape(rows, 1),
            A=_group_avg_matrix(rows, cout, g, cg * s * s * hwin),
        )
        conv3 = dict(
            w9=jnp.transpose(cw, (2, 3, 0, 1)).reshape(9, cout, cout).astype(jnp.bfloat16),
            bcol=cb.reshape(cout, 1),
            gcol=g2.reshape(cout, 1),
            becol=b2.reshape(cout, 1),
            A=_group_avg_matrix(cout, cout, g, cg * hwout),
        )
        stages.append(dict(convt=convt, conv3=conv3, s=s, cout=cout, hin=hin, hout=hout))
        hin = hout
    params["stages"] = stages
    # final Conv2d(f, in_channels, kernel=1) + Sigmoid (fused into the last conv kernel)
    params["head"] = dict(w=rand((in_channels, f), 1.0 / math.sqrt(f)),
                          b=rand((in_channels, 1), 0.02))
    return params


# ----------------------------------------------------------------------------
# forward pass: decoder(z_a + z_d)
# ----------------------------------------------------------------------------
def recon_decoder_forward(z_a, z_d, params):
    f = params["features"]
    B = z_a.shape[0]
    z = (z_a + z_d).astype(jnp.float32)

    # Linear(z_dim,512)+ReLU ; Linear(512, 16f*8*8)+ReLU
    h = linear_relu(z, params["lin1"]["w"], params["lin1"]["b"], tn=512)
    n2 = params["lin2"]["w"].shape[1]
    tn2 = 2048 if n2 % 2048 == 0 else n2
    h = linear_relu(h, params["lin2"]["w"], params["lin2"]["b"], tn=tn2)

    # Unflatten(16f, 8, 8) + ReLU (input already >= 0 after the previous ReLU -> no-op)
    x = h.reshape(B, 16 * f, 64)  # channel-major (B, C, H*W) == flattened NCHW

    for i, st in enumerate(params["stages"]):
        y = convt_gn_relu(x, st["convt"])                                   # ConvT + GN + ReLU
        x = _depth_to_space(y, st["s"], st["cout"], st["hin"], st["hin"])   # cheap XLA glue
        head = params["head"] if i == len(params["stages"]) - 1 else None
        x = conv3_gn_relu(x, st["conv3"], H=st["hout"], W=st["hout"], head=head)

    cih = params["head"]["w"].shape[0]
    hout = params["stages"][-1]["hout"]
    return x.reshape(B, cih, hout, hout)  # NCHW, matches the PyTorch module output


if __name__ == "__main__":
    key = jax.random.PRNGKey(0)
    kp, ka, kd = jax.random.split(key, 3)

    # init_features shrunk 64 -> 16 (keeps all GroupNorm group counts valid: 8/4/2/1);
    # the 8x8 unflatten and x2,x2,x2,x4 upsampling imply a fixed 256x256 output.
    features = 16
    z_dim = 128
    params = init_params(kp, in_channels=1, z_dim=z_dim, init_features=features)

    z_a = jax.random.normal(ka, (2, z_dim), jnp.float32)
    z_d = jax.random.normal(kd, (2, z_dim), jnp.float32)

    out = recon_decoder_forward(z_a, z_d, params)
    out = jax.block_until_ready(out)
    assert out.shape == (2, 1, 256, 256)
    assert bool(jnp.all(jnp.isfinite(out)))
    assert bool(jnp.all((out >= 0.0) & (out <= 1.0)))
    print("KERNEL_OK")
</pallas_src>

<mosaic_0001>
module attributes {stable_mosaic.version = 11 : i64} {
  func.func @_linear_relu_kernel(%arg0: i32, %arg1: memref<2x128xbf16, #tpu.memory_space<vmem>>, %arg2: memref<128x512xbf16, #tpu.memory_space<vmem>>, %arg3: memref<1x512xf32, #tpu.memory_space<vmem>>, %arg4: memref<2x512xbf16, #tpu.memory_space<vmem>>) attributes {dimension_semantics = [#tpu.dimension_semantics<parallel>], iteration_bounds = array<i64: 1>, scalar_prefetch = 0 : i64, scratch_operands = 0 : i64, tpu.core_type = #tpu.core_type<tc>, window_params = [{pipeline_mode = #tpu.pipeline_mode<synchronous>, transform_indices = @transform_0, window_bounds = array<i64: 2, 128>}, {transform_indices = @transform_1, window_bounds = array<i64: 128, 512>}, {transform_indices = @transform_2, window_bounds = array<i64: 1, 512>}, {transform_indices = @transform_3, window_bounds = array<i64: 2, 512>}]} {
    %c0 = arith.constant 0 : index
    %c0_0 = arith.constant 0 : index
    %0 = vector.load %arg1[%c0, %c0_0] : memref<2x128xbf16, #tpu.memory_space<vmem>>, vector<2x128xbf16>
    %c0_1 = arith.constant 0 : index
    %c0_2 = arith.constant 0 : index
    %1 = vector.load %arg2[%c0_1, %c0_2] : memref<128x512xbf16, #tpu.memory_space<vmem>>, vector<128x512xbf16>
    %cst = arith.constant dense<0.000000e+00> : vector<2x512xf32>
    %2 = tpu.matmul %0, %1, %cst {dimension_numbers = #tpu.dot_dimension_numbers<[1], [0], [0], [1], [0, 0, 1, 1], [], []>} : vector<2x128xbf16>, vector<128x512xbf16>, vector<2x512xf32> -> vector<2x512xf32>
    %c0_3 = arith.constant 0 : index
    %c0_4 = arith.constant 0 : index
    %3 = vector.load %arg3[%c0_3, %c0_4] : memref<1x512xf32, #tpu.memory_space<vmem>>, vector<1x512xf32>
    %4 = vector.broadcast %3 : vector<1x512xf32> to vector<2x512xf32>
    %5 = arith.addf %2, %4 : vector<2x512xf32>
    %cst_5 = arith.constant 0.000000e+00 : f32
    %6 = vector.broadcast %cst_5 : f32 to vector<2x512xf32>
    %7 = arith.maximumf %5, %6 : vector<2x512xf32>
    %8 = arith.truncf %7 : vector<2x512xf32> to vector<2x512xbf16>
    %c0_6 = arith.constant 0 : index
    %c0_7 = arith.constant 0 : index
    %9 = vector.load %arg4[%c0_6, %c0_7] : memref<2x512xbf16, #tpu.memory_space<vmem>>, vector<2x512xbf16>
    tpu.vector_store %arg4[%c0_6, %c0_7], %8 {strides = array<i32>} : memref<2x512xbf16, #tpu.memory_space<vmem>>, vector<2x512xbf16>,
    return
  }
  func.func @transform_0(%arg0: i32) -> (i32, i32) {
    %c0_i32 = arith.constant 0 : i32
    %c0_i32_0 = arith.constant 0 : i32
    %c0_i32_1 = arith.constant 0 : i32
    return %c0_i32, %c0_i32_0 : i32, i32
  }
  func.func @transform_1(%arg0: i32) -> (i32, i32) {
    %c0_i32 = arith.constant 0 : i32
    %c0_i32_0 = arith.constant 0 : i32
    return %c0_i32, %arg0 : i32, i32
  }
  func.func @transform_2(%arg0: i32) -> (i32, i32) {
    %c0_i32 = arith.constant 0 : i32
    %c0_i32_0 = arith.constant 0 : i32
    return %c0_i32, %arg0 : i32, i32
  }
  func.func @transform_3(%arg0: i32) -> (i32, i32) {
    %c0_i32 = arith.constant 0 : i32
    %c0_i32_0 = arith.constant 0 : i32
    return %c0_i32, %arg0 : i32, i32
  }
}

</mosaic_0001>

<llo_original>
// kernel: tpu_custom_call.1
$region0: #{tpu_custom_call.1}
  #allocation0 [shape = 'u32[]', space=smem, size = 0x4, offset = 0x4, fixed_abs, tag = 'smem constant byte address 0x4 - core index']
  #allocation1 [shape = 'u32[144,128]{1,0:T(1,128)}', space=vmem, size = 0x12000, scoped, tag = 'internal scratch']
  %s0 = inlined_call_operand.hbm [shape: bf16[2,128], index: 0, kind: input, shape index: {}]
  %s1 = inlined_call_operand.hbm [shape: bf16[128,512], index: 1, kind: input, shape index: {}]
  %s2 = inlined_call_operand.vmem [shape: f32[1,512], index: 2, kind: input, shape index: {}]
  %s3 = inlined_call_operand.hbm [shape: bf16[2,512], index: 3, kind: output, shape index: {}]
  %s4 = sld [smem:[#allocation0]]
  $region30: #{tpu_custom_call.1} parent=0
    _
  %s6 = ssub.s32 1, %s4
  %s7 = scalar_select 0, %s6, %s4
  $region1: #{tpu_custom_call.1} parent=0
    #allocation2 [shape = 'u8[512]{0}', space=vmem, size = 0x400, scoped, tag = 'input window, operand 0, single buffered']
    #allocation3 [shape = 's32[1]{0}', space=sflag, size = 0x4, scoped, tag = 'scoped memory for tpu_custom_call.1']
    #allocation4 [shape = 's32[1]{0}', space=sflag, size = 0x4, scoped, tag = 'scoped memory for tpu_custom_call.1']
    #allocation5 [shape = 'u8[131072]{0}', space=vmem, size = 0x20000, scoped, tag = 'input window, operand 1, single buffered']
    #allocation6 [shape = 's32[1]{0}', space=sflag, size = 0x4, scoped, tag = 'scoped memory for tpu_custom_call.1']
    #allocation7 [shape = 'u8[2048]{0}', space=vmem, size = 0x800, scoped, tag = 'output window, operand 0, single buffered']
    %8 = vsyncpa [#allocation3], 0
    %9 = vsyncpa [#allocation6], 0
    %10 = vsyncpa [#allocation4], 0
    // Predicated region
    $region2: #{tpu_custom_call.1} parent=1 // pred_check
      _
    $region3: #{tpu_custom_call.1} parent=1 // pred_check_branch
      %12 = sbr.rel (0) target = $region5
    $region4: #{tpu_custom_call.1} parent=1 // pred_region
      %s14 = ssub.s32 16, 16
      %15 = vsyncadd [#allocation3], %s14
      %s17 = sshll.u32 [#allocation2], 4
      %s18 = int_to_ptr.vmem [resolvable:$true] %s17
      %20 = dma.hbm_to_vmem [thread:$0]  %s0, 16, %s18, [#allocation3]
    $region5: #{tpu_custom_call.1} parent=1 // pred_fallthru
      _
    // Predicated region
    $region6: #{tpu_custom_call.1} parent=1 // pred_check
      _
    $region7: #{tpu_custom_call.1} parent=1 // pred_check_branch
      %22 = sbr.rel (0) target = $region9
    $region8: #{tpu_custom_call.1} parent=1 // pred_region
      %s24 = ssub.s32 4096, 4096
      %25 = vsyncadd [#allocation6], %s24
      %s26 = sshll.u32 [#allocation5], 4
      %s27 = int_to_ptr.vmem [resolvable:$true] %s26
      %32 = dma.hbm_to_vmem [thread:$0]  %s1, 4096, %s27, [#allocation6], 256, 256, 16
    $region9: #{tpu_custom_call.1} parent=1 // pred_fallthru
      _
    // Predicated region
    $region10: #{tpu_custom_call.1} parent=1 // pred_check
      _
    $region11: #{tpu_custom_call.1} parent=1 // pred_check_branch
      %34 = sbr.rel (0) target = $region13
    $region12: #{tpu_custom_call.1} parent=1 // pred_region
      _
    $region13: #{tpu_custom_call.1} parent=1 // pred_fallthru
      _
    // Predicated region
    $region14: #{tpu_custom_call.1} parent=1 // pred_check
      _
    $region15: #{tpu_custom_call.1} parent=1 // pred_check_branch
      %36 = sbr.rel (0) target = $region17
    $region16: #{tpu_custom_call.1} parent=1 // pred_region
      %37 = dma.done [#allocation3], 16
    $region17: #{tpu_custom_call.1} parent=1 // pred_fallthru
      _
    // Predicated region
    $region18: #{tpu_custom_call.1} parent=1 // pred_check
      _
    $region19: #{tpu_custom_call.1} parent=1 // pred_check_branch
      %39 = sbr.rel (0) target = $region21
    $region20: #{tpu_custom_call.1} parent=1 // pred_region
      %40 = dma.done [#allocation6], 4096
    $region21: #{tpu_custom_call.1} parent=1 // pred_fallthru
      _
    %v42 = vld [vmem:[#allocation2] sm:$0x1]
    %v43 = vld [vmem:[#allocation5] sm:$0xff]
    %v44 = vld [vmem:[#allocation5 + $0x8] sm:$0xff]
    %v45 = vld [vmem:[#allocation5 + $0x10] sm:$0xff]
    %v46 = vld [vmem:[#allocation5 + $0x18] sm:$0xff]
    %v47 = vld [vmem:[#allocation5 + $0x20] sm:$0xff]
    %v48 = vld [vmem:[#allocation5 + $0x28] sm:$0xff]
    %v49 = vld [vmem:[#allocation5 + $0x30] sm:$0xff]
    %v50 = vld [vmem:[#allocation5 + $0x38] sm:$0xff]
    %v51 = vld [vmem:[#allocation5 + $0x40] sm:$0xff]
    %v52 = vld [vmem:[#allocation5 + $0x48] sm:$0xff]
    %v53 = vld [vmem:[#allocation5 + $0x50] sm:$0xff]
    %v54 = vld [vmem:[#allocation5 + $0x58] sm:$0xff]
    %v55 = vld [vmem:[#allocation5 + $0x60] sm:$0xff]
    %v56 = vld [vmem:[#allocation5 + $0x68] sm:$0xff]
    %v57 = vld [vmem:[#allocation5 + $0x70] sm:$0xff]
    %v58 = vld [vmem:[#allocation5 + $0x78] sm:$0xff]
    %v59 = vld [vmem:[#allocation5 + $0x80] sm:$0xff]
    %v60 = vld [vmem:[#allocation5 + $0x88] sm:$0xff]
    %v61 = vld [vmem:[#allocation5 + $0x90] sm:$0xff]
    %v62 = vld [vmem:[#allocation5 + $0x98] sm:$0xff]
    %v63 = vld [vmem:[#allocation5 + $0xa0] sm:$0xff]
    %v64 = vld [vmem:[#allocation5 + $0xa8] sm:$0xff]
    %v65 = vld [vmem:[#allocation5 + $0xb0] sm:$0xff]
    %v66 = vld [vmem:[#allocation5 + $0xb8] sm:$0xff]
    %v67 = vld [vmem:[#allocation5 + $0xc0] sm:$0xff]
    %v68 = vld [vmem:[#allocation5 + $0xc8] sm:$0xff]
    %v69 = vld [vmem:[#allocation5 + $0xd0] sm:$0xff]
    %v70 = vld [vmem:[#allocation5 + $0xd8] sm:$0xff]
    %v71 = vld [vmem:[#allocation5 + $0xe0] sm:$0xff]
    %v72 = vld [vmem:[#allocation5 + $0xe8] sm:$0xff]
    %v73 = vld [vmem:[#allocation5 + $0xf0] sm:$0xff]
    %v74 = vld [vmem:[#allocation5 + $0xf8] sm:$0xff]
    %v75 = vld [vmem:[%s2] sm:$0xf]
    %v77 = vlaneseq
    %v78 = vshrl.u32 %v77, 7
    %v79 = vsub.s32 0, %v78
    %v80 = vrot.slane %v75, %v79
    %v81 = vlaneseq
    %v82 = vshrl.u32 %v81, 7
    %v83 = vsub.s32 1, %v82
    %v84 = vrot.slane %v75, %v83
    %v85 = vlaneseq
    %v86 = vshrl.u32 %v85, 7
    %v87 = vsub.s32 2, %v86
    %v88 = vrot.slane %v75, %v87
    %v89 = vlaneseq
    %v90 = vshrl.u32 %v89, 7
    %v91 = vsub.s32 3, %v90
    %v92 = vrot.slane %v75, %v91
    %v129 = vunpack.c.l.b16 %v43
    %v130 = vunpack.c.h.b16 %v43
    %v131 = vunpack.c.l.b16 %v44
    %v132 = vunpack.c.h.b16 %v44
    %v133 = vunpack.c.l.b16 %v45
    %v134 = vunpack.c.h.b16 %v45
    %v135 = vunpack.c.l.b16 %v46
    %v136 = vunpack.c.h.b16 %v46
    %v137 = vunpack.c.l.b16 %v47
    %v138 = vunpack.c.h.b16 %v47
    %v139 = vunpack.c.l.b16 %v48
    %v140 = vunpack.c.h.b16 %v48
    %v141 = vunpack.c.l.b16 %v49
    %v142 = vunpack.c.h.b16 %v49
    %v143 = vunpack.c.l.b16 %v50
    %v144 = vunpack.c.h.b16 %v50
    %v145 = vunpack.c.l.b16 %v51
    %v146 = vunpack.c.h.b16 %v51
    %v147 = vunpack.c.l.b16 %v52
    %v148 = vunpack.c.h.b16 %v52
    %v149 = vunpack.c.l.b16 %v53
    %v150 = vunpack.c.h.b16 %v53
    %v151 = vunpack.c.l.b16 %v54
    %v152 = vunpack.c.h.b16 %v54
    %v153 = vunpack.c.l.b16 %v55
    %v154 = vunpack.c.h.b16 %v55
    %v155 = vunpack.c.l.b16 %v56
    %v156 = vunpack.c.h.b16 %v56
    %v157 = vunpack.c.l.b16 %v57
    %v158 = vunpack.c.h.b16 %v57
    %v159 = vunpack.c.l.b16 %v58
    %v160 = vunpack.c.h.b16 %v58
    %v161 = vunpack.c.l.b16 %v59
    %v162 = vunpack.c.h.b16 %v59
    %v163 = vunpack.c.l.b16 %v60
    %v164 = vunpack.c.h.b16 %v60
    %v165 = vunpack.c.l.b16 %v61
    %v166 = vunpack.c.h.b16 %v61
    %v167 = vunpack.c.l.b16 %v62
    %v168 = vunpack.c.h.b16 %v62
    %v169 = vunpack.c.l.b16 %v63
    %v170 = vunpack.c.h.b16 %v63
    %v171 = vunpack.c.l.b16 %v64
    %v172 = vunpack.c.h.b16 %v64
    %v173 = vunpack.c.l.b16 %v65
    %v174 = vunpack.c.h.b16 %v65
    %v175 = vunpack.c.l.b16 %v66
    %v176 = vunpack.c.h.b16 %v66
    %v177 = vunpack.c.l.b16 %v67
    %v178 = vunpack.c.h.b16 %v67
    %v179 = vunpack.c.l.b16 %v68
    %v180 = vunpack.c.h.b16 %v68
    %v181 = vunpack.c.l.b16 %v69
    %v182 = vunpack.c.h.b16 %v69
    %v183 = vunpack.c.l.b16 %v70
    %v184 = vunpack.c.h.b16 %v70
    %v185 = vunpack.c.l.b16 %v71
    %v186 = vunpack.c.h.b16 %v71
    %v187 = vunpack.c.l.b16 %v72
    %v188 = vunpack.c.h.b16 %v72
    %v189 = vunpack.c.l.b16 %v73
    %v190 = vunpack.c.h.b16 %v73
    %v191 = vunpack.c.l.b16 %v74
    %v192 = vunpack.c.h.b16 %v74
    %v193 = vpack.c.b16 %v133, %v129
    %v194 = vpack.c.b16 %v134, %v130
    %v195 = vpack.c.b16 %v135, %v131
    %v196 = vpack.c.b16 %v136, %v132
    %v197 = vpack.c.b16 %v141, %v137
    %v198 = vpack.c.b16 %v142, %v138
    %v199 = vpack.c.b16 %v143, %v139
    %v200 = vpack.c.b16 %v144, %v140
    %v201 = vpack.c.b16 %v149, %v145
    %v202 = vpack.c.b16 %v150, %v146
    %v203 = vpack.c.b16 %v151, %v147
    %v204 = vpack.c.b16 %v152, %v148
    %v205 = vpack.c.b16 %v157, %v153
    %v206 = vpack.c.b16 %v158, %v154
    %v207 = vpack.c.b16 %v159, %v155
    %v208 = vpack.c.b16 %v160, %v156
    %v209 = vpack.c.b16 %v165, %v161
    %v210 = vpack.c.b16 %v166, %v162
    %v211 = vpack.c.b16 %v167, %v163
    %v212 = vpack.c.b16 %v168, %v164
    %v213 = vpack.c.b16 %v173, %v169
    %v214 = vpack.c.b16 %v174, %v170
    %v215 = vpack.c.b16 %v175, %v171
    %v216 = vpack.c.b16 %v176, %v172
    %v217 = vpack.c.b16 %v181, %v177
    %v218 = vpack.c.b16 %v182, %v178
    %v219 = vpack.c.b16 %v183, %v179
    %v220 = vpack.c.b16 %v184, %v180
    %v221 = vpack.c.b16 %v189, %v185
    %v222 = vpack.c.b16 %v190, %v186
    %v223 = vpack.c.b16 %v191, %v187
    %v224 = vpack.c.b16 %v192, %v188
    %257 = vmatprep.subr.bf16.mxu0 %v194
    %258 = vmatpush1.bf16.msra.mxu0 %v193
    %259 = vmatprep.subr.bf16.mxu0 %v198
    %260 = vmatpush1.bf16.msra.mxu0 %v197
    %261 = vmatprep.subr.bf16.mxu0 %v202
    %262 = vmatpush1.bf16.msra.mxu0 %v201
    %263 = vmatprep.subr.bf16.mxu0 %v206
    %264 = vmatpush1.bf16.msra.mxu0 %v205
    %265 = vmatprep.subr.bf16.mxu0 %v210
    %266 = vmatpush1.bf16.msra.mxu0 %v209
    %267 = vmatprep.subr.bf16.mxu0 %v214
    %268 = vmatpush1.bf16.msra.mxu0 %v213
    %269 = vmatprep.subr.bf16.mxu0 %v218
    %270 = vmatpush1.bf16.msra.mxu0 %v217
    %271 = vmatprep.subr.bf16.mxu0 %v222
    %272 = vmatpush1.bf16.msra.mxu0 %v221
    %273 = vmatprep.subr.bf16.mxu0 0
    %274 = vmatpush1.bf16.msra.mxu0 0
    %275 = vmatprep.subr.bf16.mxu0 0
    %276 = vmatpush1.bf16.msra.mxu0 0
    %277 = vmatprep.subr.bf16.mxu0 0
    %278 = vmatpush1.bf16.msra.mxu0 0
    %279 = vmatprep.subr.bf16.mxu0 0
    %280 = vmatpush1.bf16.msra.mxu0 0
    %281 = vmatprep.subr.bf16.mxu0 0
    %282 = vmatpush1.bf16.msra.mxu0 0
    %283 = vmatprep.subr.bf16.mxu0 0
    %284 = vmatpush1.bf16.msra.mxu0 0
    %285 = vmatprep.subr.bf16.mxu0 0
    %286 = vmatpush1.bf16.msra.mxu0 0
    %287 = vmatprep.subr.bf16.mxu0 0
    %288 = vmatpush1.bf16.msra.mxu0 0
    %289 = vmatprep.mubr.bf16.mxu0 0
    %290 = vmatmul.mubr.bf16.gmra.mrb[0].mxu0 %v42
    %v291 = vpop.f32.mrb[0].mxu0
    %v292 = vadd.f32 %v80, %v291
    %v293 = vpop.f32.mrb[0].mxu0
    %v294 = vadd.f32 %v84, %v293
    %v295 = vpop.f32.mrb[0].mxu0
    %v296 = vpop.f32.mrb[0].mxu0
    %297 = vdwg.mxu0
    %298 = vmatprep.subr.bf16.mxu0 %v196
    %299 = vmatpush1.bf16.msra.mxu0 %v195
    %300 = vmatprep.subr.bf16.mxu0 %v200
    %301 = vmatpush1.bf16.msra.mxu0 %v199
    %302 = vmatprep.subr.bf16.mxu0 %v204
    %303 = vmatpush1.bf16.msra.mxu0 %v203
    %304 = vmatprep.subr.bf16.mxu0 %v208
    %305 = vmatpush1.bf16.msra.mxu0 %v207
    %306 = vmatprep.subr.bf16.mxu0 %v212
    %307 = vmatpush1.bf16.msra.mxu0 %v211
    %308 = vmatprep.subr.bf16.mxu0 %v216
    %309 = vmatpush1.bf16.msra.mxu0 %v215
    %310 = vmatprep.subr.bf16.mxu0 %v220
    %311 = vmatpush1.bf16.msra.mxu0 %v219
    %312 = vmatprep.subr.bf16.mxu0 %v224
    %313 = vmatpush1.bf16.msra.mxu0 %v223
    %314 = vmatprep.subr.bf16.mxu0 0
    %315 = vmatpush1.bf16.msra.mxu0 0
    %316 = vmatprep.subr.bf16.mxu0 0
    %317 = vmatpush1.bf16.msra.mxu0 0
    %318 = vmatprep.subr.bf16.mxu0 0
    %319 = vmatpush1.bf16.msra.mxu0 0
    %320 = vmatprep.subr.bf16.mxu0 0
    %321 = vmatpush1.bf16.msra.mxu0 0
    %322 = vmatprep.subr.bf16.mxu0 0
    %323 = vmatpush1.bf16.msra.mxu0 0
    %324 = vmatprep.subr.bf16.mxu0 0
    %325 = vmatpush1.bf16.msra.mxu0 0
    %326 = vmatprep.subr.bf16.mxu0 0
    %327 = vmatpush1.bf16.msra.mxu0 0
    %328 = vmatprep.subr.bf16.mxu0 0
    %329 = vmatpush1.bf16.msra.mxu0 0
    %330 = vmatprep.mubr.bf16.mxu0 0
    %331 = vmatmul.mubr.bf16.gmra.mrb[0].mxu0 %v42
    %v332 = vpop.f32.mrb[0].mxu0
    %v333 = vadd.f32 %v88, %v332
    %v334 = vpop.f32.mrb[0].mxu0
    %v335 = vadd.f32 %v92, %v334
    %v336 = vpop.f32.mrb[0].mxu0
    %v337 = vpop.f32.mrb[0].mxu0
    %338 = vdwg.mxu0
    %v339 = vmax.f32 %v292, 0.0
    %v340 = vmax.f32 %v294, 0.0
    %v341 = vmax.f32 %v333, 0.0
    %v342 = vmax.f32 %v335, 0.0
    %v343 = vpack.c.bf16 %v339, %v339
    %v344 = vpack.c.bf16 %v340, %v340
    %v345 = vpack.c.bf16 %v341, %v341
    %v346 = vpack.c.bf16 %v342, %v342
    %v351 = vcombine.low %v343, %v344
    %v352 = vcombine.low %v345, %v346
    %v354 = vunpack.c.l.s4 1966171168
    %v355 = vunpack.c.0.s8 %v354
    %v356 = vlaneseq
    %v357 = vshrl.u32 %v356, 7
    %v358 = vsub.s32 %v355, %v357
    %v359 = vrot.slane %v351, %v358
    %v361 = vunpack.c.l.s4 1966171168
    %v362 = vunpack.c.0.s8 %v361
    %v363 = vlaneseq
    %v364 = vshrl.u32 %v363, 7
    %v365 = vsub.s32 %v362, %v364
    %v366 = vrot.slane %v352, %v365
    %v367 = vcombine.low %v359, %v366
    %v369 = vunpack.c.l.s4 1966171168
    %v370 = vunpack.c.0.s8 %v369
    %v371 = vlaneseq
    %v372 = vshrl.u32 %v371, 7
    %v373 = vsub.s32 %v370, %v372
    %v374 = vrot.slane %v367, %v373
    %376 = vst [vmem:[#allocation7] sm:$0xf] %v374
    // Predicated region
    $region22: #{tpu_custom_call.1} parent=1 // pred_check
      _
    $region23: #{tpu_custom_call.1} parent=1 // pred_check_branch
      %378 = sbr.rel (0) target = $region25
    $region24: #{tpu_custom_call.1} parent=1 // pred_region
      %s380 = ssub.s32 64, 64
      %381 = vsyncadd [#allocation4], %s380
      %s383 = sshll.u32 [#allocation7], 4
      %s384 = int_to_ptr.vmem [resolvable:$true] %s383
      %386 = dma.vmem_to_hbm [thread:$0]  %s384, 64, %s3, [#allocation4]
    $region25: #{tpu_custom_call.1} parent=1 // pred_fallthru
      _
    // Predicated region
    $region26: #{tpu_custom_call.1} parent=1 // pred_check
      _
    $region27: #{tpu_custom_call.1} parent=1 // pred_check_branch
      %388 = sbr.rel (0) target = $region29
    $region28: #{tpu_custom_call.1} parent=1 // pred_region
      %389 = dma.done [#allocation4], 64
    $region29: #{tpu_custom_call.1} parent=1 // pred_fallthru
      _
    %390 = vsyncpa [#allocation3], 1
    %391 = vsyncpa [#allocation6], 1
    %392 = vsyncpa [#allocation4], 1

</llo_original>
